<compile_context>
chip_gen: v7x
topology: tpu7x:2x2x1
jax: 0.10.0
libtpu: 0.0.40
codegen_flags: <defaults>
</compile_context>

<pallas_src>
import jax
import jax.numpy as jnp
from jax.experimental import pallas as pl
from jax.experimental.pallas import tpu as pltpu

_SOFTPLUS_THRESHOLD = 20.0  # matches torch.nn.functional.softplus default


def _mish_kernel(x_ref, o_ref):
    x = x_ref[...]
    xf = x.astype(jnp.float32)

    # Single-EUP-transcendental Mish:
    #   tanh(softplus(x)) = (e^{2x} + 2 e^x) / (e^{2x} + 2 e^x + 2)
    # with e^x clamped at exp(20) (above the threshold we take the fast path).
    e = jnp.exp(jnp.minimum(xf, _SOFTPLUS_THRESHOLD))
    t = e * (e + 2.0)
    d = t + 2.0

    # Approx reciprocal on the EUP, refined to full f32 precision with two
    # Newton-Raphson steps (pure VPU work -> free in a mem-bound kernel).
    r = pl.reciprocal(d, approx=True)
    r = r * (2.0 - d * r)
    r = r * (2.0 - d * r)

    y = jnp.where(xf > _SOFTPLUS_THRESHOLD, xf, xf * t * r)
    o_ref[...] = y.astype(o_ref.dtype)


def mish(x: jax.Array, *, target_block_bytes: int = 1 << 20) -> jax.Array:
    """Elementwise Mish. Accepts any shape (e.g. NCHW); returns same shape/dtype."""
    orig_shape = x.shape
    orig_dtype = x.dtype

    flat = x.reshape(-1)
    n = flat.shape[0]

    # Pick the widest lane dim (multiple of 128) that divides n so we avoid any
    # pad/slice round trip in the common case; otherwise pad only to a multiple
    # of 1024 lanes.
    lane = None
    for cand in (4096, 2048, 1024, 512, 256, 128):
        if n % cand == 0:
            lane = cand
            break
    padded_n = n
    if lane is None:
        lane = 1024
        padded_n = ((n + lane - 1) // lane) * lane
        flat = jnp.pad(flat, (0, padded_n - n))

    rows = padded_n // lane

    # ~1 MiB per block buffer, rows rounded to a multiple of 8 sublanes.
    elt_bytes = jnp.dtype(orig_dtype).itemsize
    target_rows = max(8, (target_block_bytes // (lane * elt_bytes)) // 8 * 8)
    if rows <= 8:
        block_rows = rows                      # full (small) sublane extent
    else:
        block_rows = min(target_rows, (rows // 8) * 8)

    grid = (pl.cdiv(rows, block_rows),)        # ragged last block is masked

    x2d = flat.reshape(rows, lane)

    out2d = pl.pallas_call(
        _mish_kernel,
        out_shape=jax.ShapeDtypeStruct((rows, lane), orig_dtype),
        grid_spec=pltpu.PrefetchScalarGridSpec(
            num_scalar_prefetch=0,
            grid=grid,
            in_specs=[pl.BlockSpec((block_rows, lane), lambda i: (i, 0))],
            out_specs=pl.BlockSpec((block_rows, lane), lambda i: (i, 0)),
        ),
        compiler_params=pltpu.CompilerParams(
            dimension_semantics=("parallel",),
        ),
    )(x2d)

    out_flat = out2d.reshape(-1)
    if padded_n != n:
        out_flat = out_flat[:n]
    return out_flat.reshape(orig_shape)


def _mish_reference(x: jax.Array) -> jax.Array:
    """Independent reference using the PyTorch-style stable softplus + tanh."""
    xf = x.astype(jnp.float32)
    sp = jnp.where(
        xf > _SOFTPLUS_THRESHOLD,
        xf,
        jnp.log1p(jnp.exp(jnp.minimum(xf, _SOFTPLUS_THRESHOLD))),
    )
    return (xf * jnp.tanh(sp)).astype(x.dtype)


if __name__ == "__main__":
    key = jax.random.PRNGKey(0)
    k0, k1 = jax.random.split(key)

    # Small NCHW input consistent with how Mish is used inside downsample3.
    x = jax.random.normal(k0, (2, 4, 16, 16), dtype=jnp.float32) * 3.0
    y = jax.block_until_ready(mish(x))
    y_ref = _mish_reference(x)
    assert y.shape == x.shape and y.dtype == x.dtype
    assert jnp.allclose(y, y_ref, atol=1e-5, rtol=1e-5)

    # Edge values (exercises the padding path: n is not a multiple of 128,
    # plus the x > 20 fast path and large-negative underflow behaviour).
    x_edge = jnp.array(
        [-50.0, -20.0, -5.0, -1.0, -0.5, 0.0, 0.5, 1.0, 5.0, 19.9, 20.1, 30.0, 50.0],
        dtype=jnp.float32,
    )
    y_edge = jax.block_until_ready(mish(x_edge))
    assert jnp.allclose(y_edge, _mish_reference(x_edge), atol=1e-5, rtol=1e-5)

    # Multi-block path with a ragged last block (rows % block_rows != 0).
    x_big = jax.random.normal(k1, (1, 32, 40, 40), dtype=jnp.float32) * 3.0
    y_big = jax.block_until_ready(mish(x_big))
    assert jnp.allclose(y_big, _mish_reference(x_big), atol=1e-5, rtol=1e-5)

    print("KERNEL_OK")
</pallas_src>

<mosaic_0001>
module attributes {stable_mosaic.version = 11 : i64} {
  func.func @_mish_kernel(%arg0: i32, %arg1: memref<1x2048xf32, #tpu.memory_space<vmem>>, %arg2: memref<1x2048xf32, #tpu.memory_space<vmem>>) attributes {dimension_semantics = [#tpu.dimension_semantics<parallel>], iteration_bounds = array<i64: 1>, scalar_prefetch = 0 : i64, scratch_operands = 0 : i64, tpu.core_type = #tpu.core_type<tc>, window_params = [{transform_indices = @transform_0, window_bounds = array<i64: 1, 2048>}, {transform_indices = @transform_1, window_bounds = array<i64: 1, 2048>}]} {
    %c0 = arith.constant 0 : index
    %c0_0 = arith.constant 0 : index
    %0 = vector.load %arg1[%c0, %c0_0] : memref<1x2048xf32, #tpu.memory_space<vmem>>, vector<1x2048xf32>
    %cst = arith.constant 2.000000e+01 : f32
    %1 = vector.broadcast %cst : f32 to vector<1x2048xf32>
    %2 = arith.minimumf %0, %1 : vector<1x2048xf32>
    %3 = math.exp %2 : vector<1x2048xf32>
    %cst_1 = arith.constant 2.000000e+00 : f32
    %4 = vector.broadcast %cst_1 : f32 to vector<1x2048xf32>
    %5 = arith.addf %3, %4 : vector<1x2048xf32>
    %6 = arith.mulf %3, %5 : vector<1x2048xf32>
    %cst_2 = arith.constant 2.000000e+00 : f32
    %7 = vector.broadcast %cst_2 : f32 to vector<1x2048xf32>
    %8 = arith.addf %6, %7 : vector<1x2048xf32>
    %9 = tpu.reciprocal %8 {approx = true} : vector<1x2048xf32> -> vector<1x2048xf32>
    %10 = arith.mulf %8, %9 : vector<1x2048xf32>
    %cst_3 = arith.constant 2.000000e+00 : f32
    %11 = vector.broadcast %cst_3 : f32 to vector<1x2048xf32>
    %12 = arith.subf %11, %10 : vector<1x2048xf32>
    %13 = arith.mulf %9, %12 : vector<1x2048xf32>
    %14 = arith.mulf %8, %13 : vector<1x2048xf32>
    %cst_4 = arith.constant 2.000000e+00 : f32
    %15 = vector.broadcast %cst_4 : f32 to vector<1x2048xf32>
    %16 = arith.subf %15, %14 : vector<1x2048xf32>
    %17 = arith.mulf %13, %16 : vector<1x2048xf32>
    %cst_5 = arith.constant 2.000000e+01 : f32
    %18 = vector.broadcast %cst_5 : f32 to vector<1x2048xf32>
    %19 = arith.cmpf ogt, %0, %18 : vector<1x2048xf32>
    %20 = arith.mulf %0, %6 : vector<1x2048xf32>
    %21 = arith.mulf %20, %17 : vector<1x2048xf32>
    %22 = arith.select %19, %0, %21 : vector<1x2048xi1>, vector<1x2048xf32>
    %c0_6 = arith.constant 0 : index
    %c0_7 = arith.constant 0 : index
    %23 = vector.load %arg2[%c0_6, %c0_7] : memref<1x2048xf32, #tpu.memory_space<vmem>>, vector<1x2048xf32>
    tpu.vector_store %arg2[%c0_6, %c0_7], %22 {strides = array<i32>} : memref<1x2048xf32, #tpu.memory_space<vmem>>, vector<1x2048xf32>,
    return
  }
  func.func @transform_0(%arg0: i32) -> (i32, i32) {
    %c0_i32 = arith.constant 0 : i32
    %c0_i32_0 = arith.constant 0 : i32
    return %arg0, %c0_i32 : i32, i32
  }
  func.func @transform_1(%arg0: i32) -> (i32, i32) {
    %c0_i32 = arith.constant 0 : i32
    %c0_i32_0 = arith.constant 0 : i32
    return %arg0, %c0_i32 : i32, i32
  }
}

</mosaic_0001>

<llo_original>
// kernel: tpu_custom_call.1
$region0: #{tpu_custom_call.1}
  #allocation0 [shape = 'u32[]', space=smem, size = 0x4, offset = 0x4, fixed_abs, tag = 'smem constant byte address 0x4 - core index']
  #allocation1 [shape = 'u32[144,128]{1,0:T(1,128)}', space=vmem, size = 0x12000, scoped, tag = 'internal scratch']
  %s0 = inlined_call_operand.hbm [shape: f32[1,2048], index: 0, kind: input, shape index: {}]
  %s1 = inlined_call_operand.hbm [shape: f32[1,2048], index: 1, kind: output, shape index: {}]
  %s2 = sld [smem:[#allocation0]]
  $region18: #{tpu_custom_call.1} parent=0
    _
  %s4 = ssub.s32 1, %s2
  %s5 = scalar_select 0, %s4, %s2
  $region1: #{tpu_custom_call.1} parent=0
    #allocation2 [shape = 'u8[8192]{0}', space=vmem, size = 0x2000, scoped, tag = 'input window, operand 0, single buffered']
    #allocation3 [shape = 's32[1]{0}', space=sflag, size = 0x4, scoped, tag = 'scoped memory for tpu_custom_call.1']
    #allocation4 [shape = 's32[1]{0}', space=sflag, size = 0x4, scoped, tag = 'scoped memory for tpu_custom_call.1']
    #allocation5 [shape = 'u8[8192]{0}', space=vmem, size = 0x2000, scoped, tag = 'output window, operand 0, single buffered']
    %6 = vsyncpa [#allocation3], 0
    %7 = vsyncpa [#allocation4], 0
    // Predicated region
    $region2: #{tpu_custom_call.1} parent=1 // pred_check
      _
    $region3: #{tpu_custom_call.1} parent=1 // pred_check_branch
      %9 = sbr.rel (0) target = $region5
    $region4: #{tpu_custom_call.1} parent=1 // pred_region
      %s11 = ssub.s32 256, 256
      %12 = vsyncadd [#allocation3], %s11
      %s14 = sshll.u32 [#allocation2], 4
      %s15 = int_to_ptr.vmem [resolvable:$true] %s14
      %17 = dma.hbm_to_vmem [thread:$0]  %s0, 256, %s15, [#allocation3]
    $region5: #{tpu_custom_call.1} parent=1 // pred_fallthru
      _
    // Predicated region
    $region6: #{tpu_custom_call.1} parent=1 // pred_check
      _
    $region7: #{tpu_custom_call.1} parent=1 // pred_check_branch
      %19 = sbr.rel (0) target = $region9
    $region8: #{tpu_custom_call.1} parent=1 // pred_region
      %20 = dma.done [#allocation3], 256
    $region9: #{tpu_custom_call.1} parent=1 // pred_fallthru
      _
    %v21 = vld [vmem:[#allocation2] sm:$0xff]
    %v22 = vld [vmem:[#allocation2 + $0x8] sm:$0xff]
    %v23 = vmin.f32 %v21, 20.0
    %v24 = vmin.f32 %v22, 20.0
    %v25 = vmul.f32 %v23, 1.442695
    %v26 = vpow.pop %v25
    %v27 = vmul.f32 %v24, 1.442695
    %v28 = vpow.pop %v27
    %v29 = vadd.f32 %v26, 2.0
    %v30 = vadd.f32 %v28, 2.0
    %v31 = vmul.f32 %v26, %v29
    %v32 = vmul.f32 %v28, %v30
    %v33 = vadd.f32 %v31, 2.0
    %v34 = vadd.f32 %v32, 2.0
    %v35 = vrcp.pop %v33
    %v36 = vrcp.pop %v34
    %v37 = vmul.f32 %v33, %v35
    %v38 = vmul.f32 %v34, %v36
    %v39 = vsub.f32 2.0, %v37
    %v40 = vsub.f32 2.0, %v38
    %v41 = vmul.f32 %v35, %v39
    %v42 = vmul.f32 %v36, %v40
    %v43 = vmul.f32 %v33, %v41
    %v44 = vmul.f32 %v34, %v42
    %v45 = vsub.f32 2.0, %v43
    %v46 = vsub.f32 2.0, %v44
    %v47 = vmul.f32 %v41, %v45
    %v48 = vmul.f32 %v42, %v46
    %vm49 = vcmp.gt.f32.partialorder %v21, 20.0
    %vm50 = vcmp.gt.f32.partialorder %v22, 20.0
    %v51 = vmul.f32 %v21, %v31
    %v52 = vmul.f32 %v22, %v32
    %v53 = vmul.f32 %v51, %v47
    %v54 = vmul.f32 %v52, %v48
    %v55 = vsel %vm49, %v21, %v53
    %v56 = vsel %vm50, %v22, %v54
    %57 = vst [vmem:[#allocation5] sm:$0xff] %v55
    %58 = vst [vmem:[#allocation5 + $0x8] sm:$0xff] %v56
    // Predicated region
    $region10: #{tpu_custom_call.1} parent=1 // pred_check
      _
    $region11: #{tpu_custom_call.1} parent=1 // pred_check_branch
      %60 = sbr.rel (0) target = $region13
    $region12: #{tpu_custom_call.1} parent=1 // pred_region
      %s62 = ssub.s32 256, 256
      %63 = vsyncadd [#allocation4], %s62
      %s65 = sshll.u32 [#allocation5], 4
      %s66 = int_to_ptr.vmem [resolvable:$true] %s65
      %68 = dma.vmem_to_hbm [thread:$0]  %s66, 256, %s1, [#allocation4]
    $region13: #{tpu_custom_call.1} parent=1 // pred_fallthru
      _
    // Predicated region
    $region14: #{tpu_custom_call.1} parent=1 // pred_check
      _
    $region15: #{tpu_custom_call.1} parent=1 // pred_check_branch
      %70 = sbr.rel (0) target = $region17
    $region16: #{tpu_custom_call.1} parent=1 // pred_region
      %71 = dma.done [#allocation4], 256
    $region17: #{tpu_custom_call.1} parent=1 // pred_fallthru
      _
    %72 = vsyncpa [#allocation3], 1
    %73 = vsyncpa [#allocation4], 1

</llo_original>
